<compile_context>
chip_gen: v6e
topology: v6e:2x2x1
jax: 0.10.0
libtpu: 0.0.40
codegen_flags: <defaults>
</compile_context>

<pallas_src>
import math
from functools import partial

import jax
import jax.numpy as jnp
from jax.experimental import pallas as pl
from jax.experimental.pallas import tpu as pltpu


def two_layer_kernel(x_ref, w1_ref, b1_ref, w2_ref, o_ref):
    # fc1 on the MXU: (TM, D) @ (D, W), f32 accumulation regardless of input dtype.
    h = jnp.dot(x_ref[...], w1_ref[...], preferred_element_type=jnp.float32)
    # bias + ReLU on the VPU in f32 (safe on v5e which has no bf16 VPU path).
    h = jnp.maximum(h + b1_ref[...], 0.0)                       # (TM, W) f32
    # fc2 (no bias): w2 (1, W) contracted against h (TM, W) on the last axis,
    # i.e. w2 @ h^T -> (1, TM): lane-dense output row (unmasked vector stores).
    # MXU cost is negligible next to fc1 (M=1); any h transpose stays hidden
    # under the per-step x DMA in this HBM-bound regime.
    o_ref[...] = jax.lax.dot_general(
        w2_ref[...], h, (((1,), (1,)), ((), ())),
        preferred_element_type=jnp.float32).astype(o_ref.dtype)


def prepare_params(w1, b1, w2, *, use_bf16=False):
    """One-time weight prep (do NOT redo per forward call).

    w1: (width, input_size) torch layout  -> transposed to (input_size, width)
    b1: (width,)                          -> (1, width) f32 row
    w2: (1, width) torch layout           -> (1, width) f32 row (used as w2 @ h^T)
    """
    w1_t = jnp.asarray(w1).T
    if use_bf16:
        w1_t = w1_t.astype(jnp.bfloat16)          # MXU-native, half the resident bytes
    b1_r = jnp.asarray(b1).reshape(1, -1).astype(jnp.float32)
    w2_r = jnp.asarray(w2).reshape(1, -1).astype(jnp.float32)
    return w1_t, b1_r, w2_r


def _vmem_budget_bytes():
    """Generation-aware VMEM budget: ~48 MiB on v7x (64 MiB/TC), ~100 MiB on v5e/v6e."""
    try:
        cap = pltpu.get_tpu_info().vmem_capacity_bytes
    except Exception:
        cap = 128 * 1024 * 1024
    if cap <= 64 * 1024 * 1024:
        return 48 * 1024 * 1024
    return 100 * 1024 * 1024


def _pick_tm(B, D, W, x_bytes, budget):
    """Pick the batch tile: big enough to amortize per-step overhead, small enough
    to fit the per-generation VMEM budget, clamped to the batch for tiny inputs."""
    weight_bytes = D * W * 4 + 2 * W * 4 + (2 << 20)      # single-buffered weights + slack
    per_row = 2 * D * x_bytes + W * 4 + 2 * 4             # 2x x bufs + h temp + 2x out bufs
    tm_vmem = max((budget - weight_bytes) // per_row, 128)
    tm_target = max(128, (4 * 1024 * 1024 + D * x_bytes - 1) // (D * x_bytes))  # ~4 MiB x block
    tm = int(min(tm_vmem, tm_target, 8192))
    tm = max((tm // 128) * 128, 128)                       # lane-aligned (1, tm) out block
    if B <= tm:
        return B                                           # single full-extent block
    return tm


@partial(jax.jit, static_argnames=("tm", "use_bf16"))
def _forward(x, w1_t, b1_r, w2_r, *, tm, use_bf16):
    D, W = w1_t.shape
    xf = x.reshape(-1, D)                          # same as torch .view(-1, input_size)
    B = xf.shape[0]
    if use_bf16:
        # Fused into the pallas_call input DMA via allow_input_fusion (no extra HBM copy).
        xf = xf.astype(jnp.bfloat16)

    num_tiles = pl.cdiv(B, tm)                     # ragged tail -> Pallas edge block (no pad)
    x_bytes = jnp.dtype(xf.dtype).itemsize
    w_bytes = jnp.dtype(w1_t.dtype).itemsize
    cost = pl.CostEstimate(
        flops=2 * B * D * W + 2 * B * W + 2 * B * W,       # fc1 + bias/relu + fc2
        transcendentals=0,
        bytes_accessed=B * D * x_bytes + D * W * w_bytes + 2 * W * 4 + B * 4,
    )

    # Constant-index weights: single-buffered (Buffered(1)) so they don't burn 2x VMEM.
    resident = lambda shape: pl.BlockSpec(shape, lambda i: (0, 0),
                                          pipeline_mode=pl.Buffered(1))

    out_row = pl.pallas_call(
        two_layer_kernel,
        out_shape=jax.ShapeDtypeStruct((1, B), jnp.float32),
        grid=(num_tiles,),
        in_specs=[
            pl.BlockSpec((tm, D), lambda i: (i, 0)),   # x: streamed, default double-buffered
            resident((D, W)),                          # W1: VMEM-resident
            resident((1, W)),                          # b1
            resident((1, W)),                          # w2
        ],
        out_specs=pl.BlockSpec((1, tm), lambda i: (0, i)),   # lane-dense output row
        compiler_params=pltpu.CompilerParams(
            dimension_semantics=("parallel",),         # shard batch tiles across TCs (v7x)
            vmem_limit_bytes=_vmem_budget_bytes(),
            allow_input_fusion=[True, False, False, False],  # fuse x reshape/cast into DMA
        ),
        cost_estimate=cost,
    )(xf, w1_t, b1_r, w2_r)

    # (1, B) row -> PyTorch-shaped (B, 1) column (same element order).
    return out_row.reshape(B, 1)


def two_layers_nn(x, w1_t, b1_r, w2_r, *, tm=None, use_bf16=None):
    """Forward pass of TwoLayersNN. x: any shape flattening to (-1, input_size).
    Returns (B, 1) float32, matching the PyTorch module."""
    D, W = w1_t.shape
    if use_bf16 is None:
        use_bf16 = (w1_t.dtype == jnp.bfloat16)
    B = int(x.size) // D
    if tm is None:
        x_bytes = 2 if use_bf16 else jnp.dtype(x.dtype).itemsize
        tm = _pick_tm(B, D, W, x_bytes, _vmem_budget_bytes())
    return _forward(x, w1_t, b1_r, w2_r, tm=int(tm), use_bf16=bool(use_bf16))


def xavier_uniform(key, shape, dtype=jnp.float32):
    # nn.init.xavier_uniform_ with gain=1.0: U(-a, a), a = sqrt(6 / (fan_in + fan_out))
    fan_out, fan_in = shape
    a = math.sqrt(6.0 / (fan_in + fan_out))
    return jax.random.uniform(key, shape, dtype=dtype, minval=-a, maxval=a)


if __name__ == "__main__":
    # Shapes consistent with TwoLayersNN.forward: x (B, C, H, W) flattened to
    # (-1, input_size).  batch=160, input_size=256, width=128 — small, but with a forced
    # tm=128 run this exercises both full tiles and a ragged (masked) edge block.
    batch, chan, hw = 160, 1, 16
    input_size = chan * hw * hw            # 256
    width = 128

    key = jax.random.PRNGKey(0)
    k_x, k_w1, k_w2 = jax.random.split(key, 3)

    x = jax.random.normal(k_x, (batch, chan, hw, hw), dtype=jnp.float32)

    # Deterministic parameter init mirroring TwoLayersNN.init_weights()
    w1 = xavier_uniform(k_w1, (width, input_size))     # fc1.weight (torch layout: out, in)
    b1 = jnp.full((width,), 0.01, dtype=jnp.float32)   # fc1.bias filled with 0.01
    w2 = xavier_uniform(k_w2, (1, width))              # fc2.weight (output_bias=False)

    # Pure-JAX reference
    xf = x.reshape(-1, input_size)
    ref = jnp.maximum(xf @ w1.T + b1[None, :], 0.0) @ w2.T

    params_f32 = prepare_params(w1, b1, w2, use_bf16=False)

    # 1) f32 path, auto tile: batch <= tm target -> single full-extent block, no masking.
    out = jax.block_until_ready(two_layers_nn(x, *params_f32))
    assert out.shape == (batch, 1)
    assert jnp.allclose(out, ref, atol=1e-5, rtol=1e-5)

    # 2) f32 path, forced tm=128: B % tm != 0 -> ragged last tile handled by Pallas edge
    #    blocks (no jnp.pad; partial output block masked on store).
    out_ragged = jax.block_until_ready(two_layers_nn(x, *params_f32, tm=128))
    assert out_ragged.shape == (batch, 1)
    assert jnp.allclose(out_ragged, ref, atol=1e-5, rtol=1e-5)

    # 3) bf16-input path (cast fused into the kernel's input DMA), f32 accumulation.
    params_bf16 = prepare_params(w1, b1, w2, use_bf16=True)
    out_bf = jax.block_until_ready(two_layers_nn(x, *params_bf16, tm=128, use_bf16=True))
    assert out_bf.shape == (batch, 1)
    assert jnp.allclose(out_bf, ref, atol=5e-2, rtol=5e-2)

    print("KERNEL_OK")
</pallas_src>

<mosaic_0001>
module attributes {stable_mosaic.version = 11 : i64} {
  func.func @two_layer_kernel(%arg0: i32, %arg1: memref<160x256xf32, #tpu.memory_space<vmem>>, %arg2: memref<256x128xf32, #tpu.memory_space<vmem>>, %arg3: memref<1x128xf32, #tpu.memory_space<vmem>>, %arg4: memref<1x128xf32, #tpu.memory_space<vmem>>, %arg5: memref<1x160xf32, #tpu.memory_space<vmem>>) attributes {dimension_semantics = [#tpu.dimension_semantics<parallel>], iteration_bounds = array<i64: 1>, scalar_prefetch = 0 : i64, scratch_operands = 0 : i64, tpu.core_type = #tpu.core_type<tc>, window_params = [{transform_indices = @transform_0, window_bounds = array<i64: 160, 256>}, {pipeline_mode = #tpu.pipeline_mode<synchronous>, transform_indices = @transform_1, window_bounds = array<i64: 256, 128>}, {pipeline_mode = #tpu.pipeline_mode<synchronous>, transform_indices = @transform_2, window_bounds = array<i64: 1, 128>}, {pipeline_mode = #tpu.pipeline_mode<synchronous>, transform_indices = @transform_3, window_bounds = array<i64: 1, 128>}, {transform_indices = @transform_4, window_bounds = array<i64: 1, 160>}]} {
    %c0 = arith.constant 0 : index
    %c0_0 = arith.constant 0 : index
    %0 = vector.load %arg1[%c0, %c0_0] : memref<160x256xf32, #tpu.memory_space<vmem>>, vector<160x256xf32>
    %c0_1 = arith.constant 0 : index
    %c0_2 = arith.constant 0 : index
    %1 = vector.load %arg2[%c0_1, %c0_2] : memref<256x128xf32, #tpu.memory_space<vmem>>, vector<256x128xf32>
    %cst = arith.constant dense<0.000000e+00> : vector<160x128xf32>
    %2 = tpu.matmul %0, %1, %cst {dimension_numbers = #tpu.dot_dimension_numbers<[1], [0], [0], [1], [0, 0, 1, 1], [], []>} : vector<160x256xf32>, vector<256x128xf32>, vector<160x128xf32> -> vector<160x128xf32>
    %c0_3 = arith.constant 0 : index
    %c0_4 = arith.constant 0 : index
    %3 = vector.load %arg3[%c0_3, %c0_4] : memref<1x128xf32, #tpu.memory_space<vmem>>, vector<1x128xf32>
    %4 = vector.broadcast %3 : vector<1x128xf32> to vector<160x128xf32>
    %5 = arith.addf %2, %4 : vector<160x128xf32>
    %cst_5 = arith.constant 0.000000e+00 : f32
    %6 = vector.broadcast %cst_5 : f32 to vector<160x128xf32>
    %7 = arith.maximumf %5, %6 : vector<160x128xf32>
    %c0_6 = arith.constant 0 : index
    %c0_7 = arith.constant 0 : index
    %8 = vector.load %arg4[%c0_6, %c0_7] : memref<1x128xf32, #tpu.memory_space<vmem>>, vector<1x128xf32>
    %cst_8 = arith.constant dense<0.000000e+00> : vector<1x160xf32>
    %9 = tpu.matmul %8, %7, %cst_8 {dimension_numbers = #tpu.dot_dimension_numbers<[1], [1], [0], [0], [0, 0, 1, 0], [], []>} : vector<1x128xf32>, vector<160x128xf32>, vector<1x160xf32> -> vector<1x160xf32>
    %c0_9 = arith.constant 0 : index
    %c0_10 = arith.constant 0 : index
    %10 = vector.load %arg5[%c0_9, %c0_10] : memref<1x160xf32, #tpu.memory_space<vmem>>, vector<1x160xf32>
    tpu.vector_store %arg5[%c0_9, %c0_10], %9 {strides = array<i32>} : memref<1x160xf32, #tpu.memory_space<vmem>>, vector<1x160xf32>,
    return
  }
  func.func @transform_0(%arg0: i32) -> (i32, i32) {
    %c0_i32 = arith.constant 0 : i32
    %c0_i32_0 = arith.constant 0 : i32
    return %arg0, %c0_i32 : i32, i32
  }
  func.func @transform_1(%arg0: i32) -> (i32, i32) {
    %c0_i32 = arith.constant 0 : i32
    %c0_i32_0 = arith.constant 0 : i32
    %c0_i32_1 = arith.constant 0 : i32
    return %c0_i32, %c0_i32_0 : i32, i32
  }
  func.func @transform_2(%arg0: i32) -> (i32, i32) {
    %c0_i32 = arith.constant 0 : i32
    %c0_i32_0 = arith.constant 0 : i32
    %c0_i32_1 = arith.constant 0 : i32
    return %c0_i32, %c0_i32_0 : i32, i32
  }
  func.func @transform_3(%arg0: i32) -> (i32, i32) {
    %c0_i32 = arith.constant 0 : i32
    %c0_i32_0 = arith.constant 0 : i32
    %c0_i32_1 = arith.constant 0 : i32
    return %c0_i32, %c0_i32_0 : i32, i32
  }
  func.func @transform_4(%arg0: i32) -> (i32, i32) {
    %c0_i32 = arith.constant 0 : i32
    %c0_i32_0 = arith.constant 0 : i32
    return %c0_i32, %arg0 : i32, i32
  }
}

</mosaic_0001>

<llo_original>
// kernel: _forward.1
$region0: #{_forward.1}
  #allocation0 [shape = 'u32[]', space=smem, size = 0x4, offset = 0x4, fixed_abs, tag = 'smem constant byte address 0x4 - core index']
  #allocation1 [shape = 'u32[144,128]{1,0:T(1,128)}', space=vmem, size = 0x12000, scoped, tag = 'internal scratch']
  %s0 = inlined_call_operand.vmem [shape: f32[160,256], index: 0, kind: input, shape index: {}]
  %s1 = inlined_call_operand.vmem [shape: f32[256,128], index: 1, kind: input, shape index: {}]
  %s2 = inlined_call_operand.vmem [shape: f32[1,128], index: 2, kind: input, shape index: {}]
  %s3 = inlined_call_operand.vmem [shape: f32[1,128], index: 3, kind: input, shape index: {}]
  %s4 = inlined_call_operand.hbm [shape: f32[1,160], index: 4, kind: output, shape index: {}]
  %s5 = sld [smem:[#allocation0]]
  $region26: #{_forward.1} parent=0
    _
  %s7 = ssub.s32 1, %s5
  %s8 = scalar_select 0, %s7, %s5
  $region1: #{_forward.1} parent=0
    #allocation2 [shape = 'u8[1024]{0}', space=vmem, size = 0x400, scoped, tag = 'output window, operand 0, single buffered']
    #allocation3 [shape = 's32[1]{0}', space=sflag, size = 0x4, scoped, tag = 'scoped memory for _forward.1']
    %9 = vsyncpa [#allocation3], 0
    // Predicated region
    $region2: #{_forward.1} parent=1 // pred_check
      _
    $region3: #{_forward.1} parent=1 // pred_check_branch
      %11 = sbr.rel (0) target = $region5
    $region4: #{_forward.1} parent=1 // pred_region
      _
    $region5: #{_forward.1} parent=1 // pred_fallthru
      _
    // Predicated region
    $region6: #{_forward.1} parent=1 // pred_check
      _
    $region7: #{_forward.1} parent=1 // pred_check_branch
      %13 = sbr.rel (0) target = $region9
    $region8: #{_forward.1} parent=1 // pred_region
      _
    $region9: #{_forward.1} parent=1 // pred_fallthru
      _
    // Predicated region
    $region10: #{_forward.1} parent=1 // pred_check
      _
    $region11: #{_forward.1} parent=1 // pred_check_branch
      %15 = sbr.rel (0) target = $region13
    $region12: #{_forward.1} parent=1 // pred_region
      _
    $region13: #{_forward.1} parent=1 // pred_fallthru
      _
    // Predicated region
    $region14: #{_forward.1} parent=1 // pred_check
      _
    $region15: #{_forward.1} parent=1 // pred_check_branch
      %17 = sbr.rel (0) target = $region17
    $region16: #{_forward.1} parent=1 // pred_region
      _
    $region17: #{_forward.1} parent=1 // pred_fallthru
      _
    %v18 = vld [vmem:[%s0] sm:$0xff]
    %v19 = vld [vmem:[%s0 + $0x8] sm:$0xff]
    %v20 = vld [vmem:[%s0 + $0x10] sm:$0xff]
    %v21 = vld [vmem:[%s0 + $0x18] sm:$0xff]
    %v22 = vld [vmem:[%s0 + $0x20] sm:$0xff]
    %v23 = vld [vmem:[%s0 + $0x28] sm:$0xff]
    %v24 = vld [vmem:[%s0 + $0x30] sm:$0xff]
    %v25 = vld [vmem:[%s0 + $0x38] sm:$0xff]
    %v26 = vld [vmem:[%s0 + $0x40] sm:$0xff]
    %v27 = vld [vmem:[%s0 + $0x48] sm:$0xff]
    %v28 = vld [vmem:[%s0 + $0x50] sm:$0xff]
    %v29 = vld [vmem:[%s0 + $0x58] sm:$0xff]
    %v30 = vld [vmem:[%s0 + $0x60] sm:$0xff]
    %v31 = vld [vmem:[%s0 + $0x68] sm:$0xff]
    %v32 = vld [vmem:[%s0 + $0x70] sm:$0xff]
    %v33 = vld [vmem:[%s0 + $0x78] sm:$0xff]
    %v34 = vld [vmem:[%s0 + $0x80] sm:$0xff]
    %v35 = vld [vmem:[%s0 + $0x88] sm:$0xff]
    %v36 = vld [vmem:[%s0 + $0x90] sm:$0xff]
    %v37 = vld [vmem:[%s0 + $0x98] sm:$0xff]
    %v38 = vld [vmem:[%s0 + $0xa0] sm:$0xff]
    %v39 = vld [vmem:[%s0 + $0xa8] sm:$0xff]
    %v40 = vld [vmem:[%s0 + $0xb0] sm:$0xff]
    %v41 = vld [vmem:[%s0 + $0xb8] sm:$0xff]
    %v42 = vld [vmem:[%s0 + $0xc0] sm:$0xff]
    %v43 = vld [vmem:[%s0 + $0xc8] sm:$0xff]
    %v44 = vld [vmem:[%s0 + $0xd0] sm:$0xff]
    %v45 = vld [vmem:[%s0 + $0xd8] sm:$0xff]
    %v46 = vld [vmem:[%s0 + $0xe0] sm:$0xff]
    %v47 = vld [vmem:[%s0 + $0xe8] sm:$0xff]
    %v48 = vld [vmem:[%s0 + $0xf0] sm:$0xff]
    %v49 = vld [vmem:[%s0 + $0xf8] sm:$0xff]
    %v50 = vld [vmem:[%s0 + $0x100] sm:$0xff]
    %v51 = vld [vmem:[%s0 + $0x108] sm:$0xff]
    %v52 = vld [vmem:[%s0 + $0x110] sm:$0xff]
    %v53 = vld [vmem:[%s0 + $0x118] sm:$0xff]
    %v54 = vld [vmem:[%s0 + $0x120] sm:$0xff]
    %v55 = vld [vmem:[%s0 + $0x128] sm:$0xff]
    %v56 = vld [vmem:[%s0 + $0x130] sm:$0xff]
    %v57 = vld [vmem:[%s0 + $0x138] sm:$0xff]
    %v58 = vld [vmem:[%s1] sm:$0xff]
    %v59 = vld [vmem:[%s1 + $0x8] sm:$0xff]
    %v60 = vld [vmem:[%s1 + $0x10] sm:$0xff]
    %v61 = vld [vmem:[%s1 + $0x18] sm:$0xff]
    %v62 = vld [vmem:[%s1 + $0x20] sm:$0xff]
    %v63 = vld [vmem:[%s1 + $0x28] sm:$0xff]
    %v64 = vld [vmem:[%s1 + $0x30] sm:$0xff]
    %v65 = vld [vmem:[%s1 + $0x38] sm:$0xff]
    %v66 = vld [vmem:[%s1 + $0x40] sm:$0xff]
    %v67 = vld [vmem:[%s1 + $0x48] sm:$0xff]
    %v68 = vld [vmem:[%s1 + $0x50] sm:$0xff]
    %v69 = vld [vmem:[%s1 + $0x58] sm:$0xff]
    %v70 = vld [vmem:[%s1 + $0x60] sm:$0xff]
    %v71 = vld [vmem:[%s1 + $0x68] sm:$0xff]
    %v72 = vld [vmem:[%s1 + $0x70] sm:$0xff]
    %v73 = vld [vmem:[%s1 + $0x78] sm:$0xff]
    %v74 = vld [vmem:[%s1 + $0x80] sm:$0xff]
    %v75 = vld [vmem:[%s1 + $0x88] sm:$0xff]
    %v76 = vld [vmem:[%s1 + $0x90] sm:$0xff]
    %v77 = vld [vmem:[%s1 + $0x98] sm:$0xff]
    %v78 = vld [vmem:[%s1 + $0xa0] sm:$0xff]
    %v79 = vld [vmem:[%s1 + $0xa8] sm:$0xff]
    %v80 = vld [vmem:[%s1 + $0xb0] sm:$0xff]
    %v81 = vld [vmem:[%s1 + $0xb8] sm:$0xff]
    %v82 = vld [vmem:[%s1 + $0xc0] sm:$0xff]
    %v83 = vld [vmem:[%s1 + $0xc8] sm:$0xff]
    %v84 = vld [vmem:[%s1 + $0xd0] sm:$0xff]
    %v85 = vld [vmem:[%s1 + $0xd8] sm:$0xff]
    %v86 = vld [vmem:[%s1 + $0xe0] sm:$0xff]
    %v87 = vld [vmem:[%s1 + $0xe8] sm:$0xff]
    %v88 = vld [vmem:[%s1 + $0xf0] sm:$0xff]
    %v89 = vld [vmem:[%s1 + $0xf8] sm:$0xff]
    %v90 = vld [vmem:[%s2] sm:$0x1]
    %v92 = vlaneseq
    %v93 = vshrl.u32 %v92, 7
    %v94 = vsub.s32 0, %v93
    %v95 = vrot.slane %v90, %v94
    %97 = vmatprep.subr.mxu0 0.0
    %98 = vmatpush1.msra.mxu0 %v73
    %99 = vmatprep.subr.mxu0 0.0
    %100 = vmatpush1.msra.mxu0 %v72
    %101 = vmatprep.subr.mxu0 0.0
    %102 = vmatpush1.msra.mxu0 %v71
    %103 = vmatprep.subr.mxu0 0.0
    %104 = vmatpush1.msra.mxu0 %v70
    %105 = vmatprep.subr.mxu0 0.0
    %106 = vmatpush1.msra.mxu0 %v69
    %107 = vmatprep.subr.mxu0 0.0
    %108 = vmatpush1.msra.mxu0 %v68
    %109 = vmatprep.subr.mxu0 0.0
    %110 = vmatpush1.msra.mxu0 %v67
    %111 = vmatprep.subr.mxu0 0.0
    %112 = vmatpush1.msra.mxu0 %v66
    %113 = vmatprep.subr.mxu0 0.0
    %114 = vmatpush1.msra.mxu0 %v65
    %115 = vmatprep.subr.mxu0 0.0
    %116 = vmatpush1.msra.mxu0 %v64
    %117 = vmatprep.subr.mxu0 0.0
    %118 = vmatpush1.msra.mxu0 %v63
    %119 = vmatprep.subr.mxu0 0.0
    %120 = vmatpush1.msra.mxu0 %v62
    %121 = vmatprep.subr.mxu0 0.0
    %122 = vmatpush1.msra.mxu0 %v61
    %123 = vmatprep.subr.mxu0 0.0
    %124 = vmatpush1.msra.mxu0 %v60
    %125 = vmatprep.subr.mxu0 0.0
    %126 = vmatpush1.msra.mxu0 %v59
    %127 = vmatprep.subr.mxu0 0.0
    %128 = vmatpush1.msra.mxu0 %v58
    %129 = vmatprep.subr.mxu0 0.0
    %130 = vmatpush2.msra.mxu0 %v89
    %131 = vmatprep.subr.mxu0 0.0
    %132 = vmatpush2.msra.mxu0 %v88
    %133 = vmatprep.subr.mxu0 0.0
    %134 = vmatpush2.msra.mxu0 %v87
    %135 = vmatprep.subr.mxu0 0.0
    %136 = vmatpush2.msra.mxu0 %v86
    %137 = vmatprep.subr.mxu0 0.0
    %138 = vmatpush2.msra.mxu0 %v85
    %139 = vmatprep.subr.mxu0 0.0
    %140 = vmatpush2.msra.mxu0 %v84
    %141 = vmatprep.subr.mxu0 0.0
    %142 = vmatpush2.msra.mxu0 %v83
    %143 = vmatprep.subr.mxu0 0.0
    %144 = vmatpush2.msra.mxu0 %v82
    %145 = vmatprep.subr.mxu0 0.0
    %146 = vmatpush2.msra.mxu0 %v81
    %147 = vmatprep.subr.mxu0 0.0
    %148 = vmatpush2.msra.mxu0 %v80
    %149 = vmatprep.subr.mxu0 0.0
    %150 = vmatpush2.msra.mxu0 %v79
    %151 = vmatprep.subr.mxu0 0.0
    %152 = vmatpush2.msra.mxu0 %v78
    %153 = vmatprep.subr.mxu0 0.0
    %154 = vmatpush2.msra.mxu0 %v77
    %155 = vmatprep.subr.mxu0 0.0
    %156 = vmatpush2.msra.mxu0 %v76
    %157 = vmatprep.subr.mxu0 0.0
    %158 = vmatpush2.msra.mxu0 %v75
    %159 = vmatprep.subr.mxu0 0.0
    %160 = vmatpush2.msra.mxu0 %v74
    %161 = vmatprep.mubr.f32.mxu0 %v19
    %162 = vmatmul.mubr.f32.gmra.mxu0 %v18
    %v163 = vpop.f32.mrf.mxu0
    %v164 = vadd.f32 %v95, %v163
    %v165 = vpop.f32.mrf.mxu0
    %166 = vmatprep.mubr.f32.mxu0 %v21
    %167 = vmatmul.mubr.f32.gmra.mxu0 %v20
    %v168 = vpop.f32.mrf.mxu0
    %v169 = vadd.f32 %v95, %v168
    %v170 = vpop.f32.mrf.mxu0
    %171 = vmatprep.mubr.f32.mxu0 %v23
    %172 = vmatmul.mubr.f32.gmra.mxu0 %v22
    %v173 = vpop.f32.mrf.mxu0
    %v174 = vadd.f32 %v95, %v173
    %v175 = vpop.f32.mrf.mxu0
    %176 = vmatprep.mubr.f32.mxu0 %v25
    %177 = vmatmul.mubr.f32.gmra.mxu0 %v24
    %v178 = vpop.f32.mrf.mxu0
    %v179 = vadd.f32 %v95, %v178
    %v180 = vpop.f32.mrf.mxu0
    %181 = vmatprep.mubr.f32.mxu0 %v27
    %182 = vmatmul.mubr.f32.gmra.mxu0 %v26
    %v183 = vpop.f32.mrf.mxu0
    %v184 = vadd.f32 %v95, %v183
    %v185 = vpop.f32.mrf.mxu0
    %186 = vmatprep.mubr.f32.mxu0 %v29
    %187 = vmatmul.mubr.f32.gmra.mxu0 %v28
    %v188 = vpop.f32.mrf.mxu0
    %v189 = vadd.f32 %v95, %v188
    %v190 = vpop.f32.mrf.mxu0
    %191 = vmatprep.mubr.f32.mxu0 %v31
    %192 = vmatmul.mubr.f32.gmra.mxu0 %v30
    %v193 = vpop.f32.mrf.mxu0
    %v194 = vadd.f32 %v95, %v193
    %v195 = vpop.f32.mrf.mxu0
    %196 = vmatprep.mubr.f32.mxu0 %v33
    %197 = vmatmul.mubr.f32.gmra.mxu0 %v32
    %v198 = vpop.f32.mrf.mxu0
    %v199 = vadd.f32 %v95, %v198
    %v200 = vpop.f32.mrf.mxu0
    %201 = vmatprep.mubr.f32.mxu0 %v35
    %202 = vmatmul.mubr.f32.gmra.mxu0 %v34
    %v203 = vpop.f32.mrf.mxu0
    %v204 = vadd.f32 %v95, %v203
    %v205 = vpop.f32.mrf.mxu0
    %206 = vmatprep.mubr.f32.mxu0 %v37
    %207 = vmatmul.mubr.f32.gmra.mxu0 %v36
    %v208 = vpop.f32.mrf.mxu0
    %v209 = vadd.f32 %v95, %v208
    %v210 = vpop.f32.mrf.mxu0
    %211 = vmatprep.mubr.f32.mxu0 %v39
    %212 = vmatmul.mubr.f32.gmra.mxu0 %v38
    %v213 = vpop.f32.mrf.mxu0
    %v214 = vadd.f32 %v95, %v213
    %v215 = vpop.f32.mrf.mxu0
    %216 = vmatprep.mubr.f32.mxu0 %v41
    %217 = vmatmul.mubr.f32.gmra.mxu0 %v40
    %v218 = vpop.f32.mrf.mxu0
    %v219 = vadd.f32 %v95, %v218
    %v220 = vpop.f32.mrf.mxu0
    %221 = vmatprep.mubr.f32.mxu0 %v43
    %222 = vmatmul.mubr.f32.gmra.mxu0 %v42
    %v223 = vpop.f32.mrf.mxu0
    %v224 = vadd.f32 %v95, %v223
    %v225 = vpop.f32.mrf.mxu0
    %226 = vmatprep.mubr.f32.mxu0 %v45
    %227 = vmatmul.mubr.f32.gmra.mxu0 %v44
    %v228 = vpop.f32.mrf.mxu0
    %v229 = vadd.f32 %v95, %v228
    %v230 = vpop.f32.mrf.mxu0
    %231 = vmatprep.mubr.f32.mxu0 %v47
    %232 = vmatmul.mubr.f32.gmra.mxu0 %v46
    %v233 = vpop.f32.mrf.mxu0
    %v234 = vadd.f32 %v95, %v233
    %v235 = vpop.f32.mrf.mxu0
    %236 = vmatprep.mubr.f32.mxu0 %v49
    %237 = vmatmul.mubr.f32.gmra.mxu0 %v48
    %v238 = vpop.f32.mrf.mxu0
    %v239 = vadd.f32 %v95, %v238
    %v240 = vpop.f32.mrf.mxu0
    %241 = vmatprep.mubr.f32.mxu0 %v51
    %242 = vmatmul.mubr.f32.gmra.mxu0 %v50
    %v243 = vpop.f32.mrf.mxu0
    %v244 = vadd.f32 %v95, %v243
    %v245 = vpop.f32.mrf.mxu0
    %246 = vmatprep.mubr.f32.mxu0 %v53
    %247 = vmatmul.mubr.f32.gmra.mxu0 %v52
    %v248 = vpop.f32.mrf.mxu0
    %v249 = vadd.f32 %v95, %v248
    %v250 = vpop.f32.mrf.mxu0
    %251 = vmatprep.mubr.f32.mxu0 %v55
    %252 = vmatmul.mubr.f32.gmra.mxu0 %v54
    %v253 = vpop.f32.mrf.mxu0
    %v254 = vadd.f32 %v95, %v253
    %v255 = vpop.f32.mrf.mxu0
    %256 = vmatprep.mubr.f32.mxu0 %v57
    %257 = vmatmul.mubr.f32.gmra.mxu0 %v56
    %v258 = vpop.f32.mrf.mxu0
    %v259 = vadd.f32 %v95, %v258
    %v260 = vpop.f32.mrf.mxu0
    %261 = vdwg.mxu0
    %v262 = vmax.f32 %v164, 0.0
    %v263 = vmax.f32 %v169, 0.0
    %v264 = vmax.f32 %v174, 0.0
    %v265 = vmax.f32 %v179, 0.0
    %v266 = vmax.f32 %v184, 0.0
    %v267 = vmax.f32 %v189, 0.0
    %v268 = vmax.f32 %v194, 0.0
    %v269 = vmax.f32 %v199, 0.0
    %v270 = vmax.f32 %v204, 0.0
    %v271 = vmax.f32 %v209, 0.0
    %v272 = vmax.f32 %v214, 0.0
    %v273 = vmax.f32 %v219, 0.0
    %v274 = vmax.f32 %v224, 0.0
    %v275 = vmax.f32 %v229, 0.0
    %v276 = vmax.f32 %v234, 0.0
    %v277 = vmax.f32 %v239, 0.0
    %v278 = vmax.f32 %v244, 0.0
    %v279 = vmax.f32 %v249, 0.0
    %v280 = vmax.f32 %v254, 0.0
    %v281 = vmax.f32 %v259, 0.0
    %v282 = vld [vmem:[%s3] sm:$0x1]
    %283 = vmatprep.subr.mxu0 0.0
    %284 = vmatpush1.xpose.msra.mxu0 %v277
    %285 = vmatprep.subr.mxu0 0.0
    %286 = vmatpush1.xpose.msra.mxu0 %v276
    %287 = vmatprep.subr.mxu0 0.0
    %288 = vmatpush1.xpose.msra.mxu0 %v275
    %289 = vmatprep.subr.mxu0 0.0
    %290 = vmatpush1.xpose.msra.mxu0 %v274
    %291 = vmatprep.subr.mxu0 0.0
    %292 = vmatpush1.xpose.msra.mxu0 %v273
    %293 = vmatprep.subr.mxu0 0.0
    %294 = vmatpush1.xpose.msra.mxu0 %v272
    %295 = vmatprep.subr.mxu0 0.0
    %296 = vmatpush1.xpose.msra.mxu0 %v271
    %297 = vmatprep.subr.mxu0 0.0
    %298 = vmatpush1.xpose.msra.mxu0 %v270
    %299 = vmatprep.subr.mxu0 0.0
    %300 = vmatpush1.xpose.msra.mxu0 %v269
    %301 = vmatprep.subr.mxu0 0.0
    %302 = vmatpush1.xpose.msra.mxu0 %v268
    %303 = vmatprep.subr.mxu0 0.0
    %304 = vmatpush1.xpose.msra.mxu0 %v267
    %305 = vmatprep.subr.mxu0 0.0
    %306 = vmatpush1.xpose.msra.mxu0 %v266
    %307 = vmatprep.subr.mxu0 0.0
    %308 = vmatpush1.xpose.msra.mxu0 %v265
    %309 = vmatprep.subr.mxu0 0.0
    %310 = vmatpush1.xpose.msra.mxu0 %v264
    %311 = vmatprep.subr.mxu0 0.0
    %312 = vmatpush1.xpose.msra.mxu0 %v263
    %313 = vmatprep.subr.mxu0 0.0
    %314 = vmatpush1.xpose.msra.mxu0 %v262
    %315 = vmatprep.subr.mxu0 0.0
    %316 = vmatpush2.xpose.msra.mxu0 0.0
    %317 = vmatprep.subr.mxu0 0.0
    %318 = vmatpush2.xpose.msra.mxu0 0.0
    %319 = vmatprep.subr.mxu0 0.0
    %320 = vmatpush2.xpose.msra.mxu0 0.0
    %321 = vmatprep.subr.mxu0 0.0
    %322 = vmatpush2.xpose.msra.mxu0 0.0
    %323 = vmatprep.subr.mxu0 0.0
    %324 = vmatpush2.xpose.msra.mxu0 0.0
    %325 = vmatprep.subr.mxu0 0.0
    %326 = vmatpush2.xpose.msra.mxu0 0.0
    %327 = vmatprep.subr.mxu0 0.0
    %328 = vmatpush2.xpose.msra.mxu0 0.0
    %329 = vmatprep.subr.mxu0 0.0
    %330 = vmatpush2.xpose.msra.mxu0 0.0
    %331 = vmatprep.subr.mxu0 0.0
    %332 = vmatpush2.xpose.msra.mxu0 0.0
    %333 = vmatprep.subr.mxu0 0.0
    %334 = vmatpush2.xpose.msra.mxu0 0.0
    %335 = vmatprep.subr.mxu0 0.0
    %336 = vmatpush2.xpose.msra.mxu0 0.0
    %337 = vmatprep.subr.mxu0 0.0
    %338 = vmatpush2.xpose.msra.mxu0 0.0
    %339 = vmatprep.subr.mxu0 0.0
    %340 = vmatpush2.xpose.msra.mxu0 %v281
    %341 = vmatprep.subr.mxu0 0.0
    %342 = vmatpush2.xpose.msra.mxu0 %v280
    %343 = vmatprep.subr.mxu0 0.0
    %344 = vmatpush2.xpose.msra.mxu0 %v279
    %345 = vmatprep.subr.mxu0 0.0
    %346 = vmatpush2.xpose.msra.mxu0 %v278
    %347 = vmatprep.mubr.f32.mxu0 0.0
    %348 = vmatmul.mubr.f32.gmra.mxu0 %v282
    %v349 = vpop.f32.mrf.mxu0
    %v350 = vadd.f32 0.0, %v349
    %v351 = vpop.f32.mrf.mxu0
    %v352 = vadd.f32 0.0, %v351
    %353 = vdwg.mxu0
    %v356 = vcombine.low %v350, %v352
    %v358 = vunpack.c.l.s4 1966171168
    %v359 = vunpack.c.0.s8 %v358
    %v360 = vlaneseq
    %v361 = vshrl.u32 %v360, 7
    %v362 = vsub.s32 %v359, %v361
    %v363 = vrot.slane %v356, %v362
    %v365 = vunpack.c.l.s4 1966171168
    %v366 = vunpack.c.0.s8 %v365
    %v367 = vlaneseq
    %v368 = vshrl.u32 %v367, 7
    %v369 = vsub.s32 %v366, %v368
    %v370 = vrot.slane %v363, %v369
    %v372 = vlaneseq
    %vm373 = vcmp.ge.s32.totalorder %v372, 0
    %vm374 = vcmp.lt.s32.totalorder %v372, 160
    %vm375 = vmand %vm373, %vm374
    %376 = vst.msk [vmem:[#allocation2] sm:$0x3] %vm375, %v370
    // Predicated region
    $region18: #{_forward.1} parent=1 // pred_check
      _
    $region19: #{_forward.1} parent=1 // pred_check_branch
      %378 = sbr.rel (0) target = $region21
    $region20: #{_forward.1} parent=1 // pred_region
      %s380 = ssub.s32 32, 32
      %381 = vsyncadd [#allocation3], %s380
      %s383 = sshll.u32 [#allocation2], 4
      %s384 = int_to_ptr.vmem [resolvable:$true] %s383
      %386 = dma.vmem_to_hbm [thread:$0]  %s384, 32, %s4, [#allocation3]
    $region21: #{_forward.1} parent=1 // pred_fallthru
      _
    // Predicated region
    $region22: #{_forward.1} parent=1 // pred_check
      _
    $region23: #{_forward.1} parent=1 // pred_check_branch
      %388 = sbr.rel (0) target = $region25
    $region24: #{_forward.1} parent=1 // pred_region
      %389 = dma.done [#allocation3], 32
    $region25: #{_forward.1} parent=1 // pred_fallthru
      _
    %390 = vsyncpa [#allocation3], 1

</llo_original>
